<compile_context>
chip_gen: v6e
topology: v6e:2x2x1
jax: 0.10.0
libtpu: 0.0.40
codegen_flags: <defaults>
</compile_context>

<pallas_src>
import jax
import jax.numpy as jnp
from jax import lax
from jax.experimental import pallas as pl
from jax.experimental.pallas import tpu as pltpu


def _round_up(v, m):
    return ((v + m - 1) // m) * m


def _make_mixing_kernel(scale):
    """Builds the per-(batch, ray-tile) kernel body."""

    def kernel(x_ref, slots_ref, wq_t_ref, wk_t_ref, s_ref, w_ref):
        x = x_ref[0]                                          # [TR, Din]
        slots = slots_ref[0]                                  # [S, Dslot]

        # q = x @ Wq^T  == x @ wq_t      (plain MN matmul, [TR, Datt])
        q = jnp.dot(x, wq_t_ref[...], preferred_element_type=jnp.float32)

        # k = slots @ Wk^T == slots @ wk_t   (recomputed per tile; tiny MXU
        # cost, keeps both grid axes independent/parallel)   [S, Datt]
        k = jnp.dot(slots, wk_t_ref[...], preferred_element_type=jnp.float32)

        # dots = q @ k^T * scale  (contract last dims of both; NT matmul)
        dots = lax.dot_general(
            q, k,
            dimension_numbers=(((1,), (1,)), ((), ())),
            preferred_element_type=jnp.float32) * scale       # [TR, S]

        # softmax over slots (dim=2 in the torch code), f32 throughout
        m = jnp.max(dots, axis=-1, keepdims=True)
        e = jnp.exp(dots - m)
        w = e * pl.reciprocal(jnp.sum(e, axis=-1, keepdims=True), approx=False)

        # s = sum_s w[i,s] * slots[s,:]  ==  w @ slots        [TR, Dslot]
        s = jnp.dot(w, slots.astype(jnp.float32),
                    preferred_element_type=jnp.float32)
        s_ref[0] = s.astype(s_ref.dtype)
        w_ref[0] = w.astype(w_ref.dtype)

    return kernel


def mixing_block(x, slot_latents, wq, wk, *, ray_tile=512):
    """Pallas implementation of MixingBlock.forward (layer_norm=False).

    Args:
      x:            [B, R, input_dim] float32
      slot_latents: [B, S, slot_dim]  float32
      wq:           [att_dim, input_dim]  (to_q weight, nn.Linear layout)
      wk:           [att_dim, slot_dim]   (to_k weight, nn.Linear layout)
      ray_tile:     target ray-tile size (rounded to a multiple of 8)
    Returns:
      (s, w): s [B, R, slot_dim], w [B, R, S]
    """
    B, R, Din = x.shape
    _, S, Dslot = slot_latents.shape
    Datt, _ = wq.shape
    scale = float(Datt) ** (-0.5)

    # One-time wrapper transpose -> [in, out] so all in-kernel matmuls are MN.
    wq_t = jnp.transpose(wq)            # [Din, Datt]
    wk_t = jnp.transpose(wk)            # [Dslot, Datt]

    # Ray tiling: TR a multiple of 8; prefer a TR that divides R exactly so
    # R_pad == R and no post-call slice / padded-row writeback is needed.
    tr_target = max(8, min(_round_up(ray_tile, 8), _round_up(R, 8)))
    TR = None
    for cand in range(tr_target, 7, -8):
        if R % cand == 0:
            TR = cand
            break
    if TR is None:
        TR = tr_target
    R_pad = _round_up(R, TR)
    x_in = x if R_pad == R else jnp.pad(x, ((0, 0), (0, R_pad - R), (0, 0)))

    grid = (B, R_pad // TR)

    out_shapes = (
        jax.ShapeDtypeStruct((B, R_pad, Dslot), x.dtype),
        jax.ShapeDtypeStruct((B, R_pad, S), x.dtype),
    )

    grid_spec = pltpu.PrefetchScalarGridSpec(
        num_scalar_prefetch=0,
        grid=grid,
        in_specs=[
            pl.BlockSpec((1, TR, Din), lambda b, r: (b, r, 0)),     # x tile
            pl.BlockSpec((1, S, Dslot), lambda b, r: (b, 0, 0)),    # slots (per batch)
            pl.BlockSpec((Din, Datt), lambda b, r: (0, 0)),         # Wq^T (resident)
            pl.BlockSpec((Dslot, Datt), lambda b, r: (0, 0)),       # Wk^T (resident)
        ],
        out_specs=[
            pl.BlockSpec((1, TR, Dslot), lambda b, r: (b, r, 0)),   # s tile
            pl.BlockSpec((1, TR, S), lambda b, r: (b, r, 0)),       # w tile (full S)
        ],
    )

    # Rough VMEM estimate (f32 bytes); raise scoped limit only when needed.
    est_bytes = 4 * (
        2 * (TR * Din)                                  # x tiles (double-buffered)
        + 2 * (S * Dslot)                               # slots
        + (Din * Datt + Dslot * Datt)                   # resident weights
        + 2 * (TR * Dslot + TR * S)                     # output tiles (double-buffered)
        + (TR * Datt + S * Datt + TR * S + TR * Dslot)  # f32 temporaries
    )
    try:
        phys_vmem = pltpu.get_tpu_info().vmem_capacity_bytes
    except Exception:
        phys_vmem = 64 << 20
    vmem_cap = (phys_vmem * 3) // 4
    # Threshold below v5e's 16 MiB scoped default so large configs don't OOM.
    vmem_limit = (min(est_bytes + (8 << 20), vmem_cap)
                  if est_bytes > (12 << 20) else None)

    s_pad_out, w_pad_out = pl.pallas_call(
        _make_mixing_kernel(scale),
        out_shape=out_shapes,
        grid_spec=grid_spec,
        compiler_params=pltpu.CompilerParams(
            dimension_semantics=("parallel", "parallel"),
            vmem_limit_bytes=vmem_limit),
    )(x_in, slot_latents, wq_t, wk_t)

    # Identity in the common case (R_pad == R); only strips ray padding.
    s_out = s_pad_out if R_pad == R else s_pad_out[:, :R, :]
    w_out = w_pad_out if R_pad == R else w_pad_out[:, :R, :]
    return s_out, w_out


def mixing_block_ref(x, slot_latents, wq, wk):
    """Plain-JAX reference mirroring the PyTorch forward (layer_norm=False)."""
    Datt = wq.shape[0]
    scale = float(Datt) ** (-0.5)
    q = jnp.einsum('bri,oi->bro', x, wq)
    k = jnp.einsum('bsi,oi->bso', slot_latents, wk)
    dots = jnp.einsum('bid,bsd->bis', q, k) * scale
    w = jax.nn.softmax(dots, axis=2)
    s = jnp.einsum('bis,bsd->bid', w, slot_latents)
    return s, w


if __name__ == "__main__":
    # Small shapes consistent with the module's forward signature.
    B, R, S = 2, 16, 8          # batch, num_rays, num_slots
    input_dim, slot_dim, att_dim = 32, 64, 64

    key = jax.random.PRNGKey(0)
    kx, ks, kq, kk = jax.random.split(key, 4)

    x = jax.random.normal(kx, (B, R, input_dim), dtype=jnp.float32)
    slot_latents = jax.random.normal(ks, (B, S, slot_dim), dtype=jnp.float32)

    # Deterministic synthetic parameters (PyTorch Linear layout: [out, in]).
    wq = (jax.random.normal(kq, (att_dim, input_dim), dtype=jnp.float32)
          * (1.0 / input_dim ** 0.5))
    wk = (jax.random.normal(kk, (att_dim, slot_dim), dtype=jnp.float32)
          * (1.0 / slot_dim ** 0.5))

    s_out, w_out = mixing_block(x, slot_latents, wq, wk)
    jax.block_until_ready((s_out, w_out))

    s_ref, w_ref = mixing_block_ref(x, slot_latents, wq, wk)
    assert s_out.shape == s_ref.shape and w_out.shape == w_ref.shape
    assert jnp.allclose(s_out, s_ref, atol=1e-4, rtol=1e-4)
    assert jnp.allclose(w_out, w_ref, atol=1e-5, rtol=1e-4)

    # TODO(synk): layer_norm=True branch (nn.LayerNorm on x and s) not
    # implemented since the module default is layer_norm=False.
    print("KERNEL_OK")
</pallas_src>

<mosaic_0001>
module attributes {stable_mosaic.version = 11 : i64} {
  func.func @kernel(%arg0: i32, %arg1: i32, %arg2: memref<1x16x32xf32, #tpu.memory_space<vmem>>, %arg3: memref<1x8x64xf32, #tpu.memory_space<vmem>>, %arg4: memref<32x64xf32, #tpu.memory_space<vmem>>, %arg5: memref<64x64xf32, #tpu.memory_space<vmem>>, %arg6: memref<1x16x64xf32, #tpu.memory_space<vmem>>, %arg7: memref<1x16x8xf32, #tpu.memory_space<vmem>>) attributes {dimension_semantics = [#tpu.dimension_semantics<parallel>, #tpu.dimension_semantics<parallel>], iteration_bounds = array<i64: 2, 1>, scalar_prefetch = 0 : i64, scratch_operands = 0 : i64, tpu.core_type = #tpu.core_type<tc>, window_params = [{transform_indices = @transform_0, window_bounds = array<i64: 1, 16, 32>}, {transform_indices = @transform_1, window_bounds = array<i64: 1, 8, 64>}, {pipeline_mode = #tpu.pipeline_mode<synchronous>, transform_indices = @transform_2, window_bounds = array<i64: 32, 64>}, {pipeline_mode = #tpu.pipeline_mode<synchronous>, transform_indices = @transform_3, window_bounds = array<i64: 64, 64>}, {transform_indices = @transform_4, window_bounds = array<i64: 1, 16, 64>}, {transform_indices = @transform_5, window_bounds = array<i64: 1, 16, 8>}]} {
    %c0 = arith.constant 0 : index
    %c0_0 = arith.constant 0 : index
    %c0_1 = arith.constant 0 : index
    %0 = vector.load %arg2[%c0, %c0_0, %c0_1] : memref<1x16x32xf32, #tpu.memory_space<vmem>>, vector<1x16x32xf32>
    %1 = vector.shape_cast %0 : vector<1x16x32xf32> to vector<16x32xf32>
    %c0_2 = arith.constant 0 : index
    %c0_3 = arith.constant 0 : index
    %c0_4 = arith.constant 0 : index
    %2 = vector.load %arg3[%c0_2, %c0_3, %c0_4] : memref<1x8x64xf32, #tpu.memory_space<vmem>>, vector<1x8x64xf32>
    %3 = vector.shape_cast %2 : vector<1x8x64xf32> to vector<8x64xf32>
    %c0_5 = arith.constant 0 : index
    %c0_6 = arith.constant 0 : index
    %4 = vector.load %arg4[%c0_5, %c0_6] : memref<32x64xf32, #tpu.memory_space<vmem>>, vector<32x64xf32>
    %cst = arith.constant dense<0.000000e+00> : vector<16x64xf32>
    %5 = tpu.matmul %1, %4, %cst {dimension_numbers = #tpu.dot_dimension_numbers<[1], [0], [0], [1], [0, 0, 1, 1], [], []>} : vector<16x32xf32>, vector<32x64xf32>, vector<16x64xf32> -> vector<16x64xf32>
    %c0_7 = arith.constant 0 : index
    %c0_8 = arith.constant 0 : index
    %6 = vector.load %arg5[%c0_7, %c0_8] : memref<64x64xf32, #tpu.memory_space<vmem>>, vector<64x64xf32>
    %cst_9 = arith.constant dense<0.000000e+00> : vector<8x64xf32>
    %7 = tpu.matmul %3, %6, %cst_9 {dimension_numbers = #tpu.dot_dimension_numbers<[1], [0], [0], [1], [0, 0, 1, 1], [], []>} : vector<8x64xf32>, vector<64x64xf32>, vector<8x64xf32> -> vector<8x64xf32>
    %cst_10 = arith.constant dense<0.000000e+00> : vector<16x8xf32>
    %8 = tpu.matmul %5, %7, %cst_10 {dimension_numbers = #tpu.dot_dimension_numbers<[1], [1], [0], [0], [0, 0, 1, 0], [], []>} : vector<16x64xf32>, vector<8x64xf32>, vector<16x8xf32> -> vector<16x8xf32>
    %cst_11 = arith.constant 1.250000e-01 : f32
    %9 = vector.broadcast %cst_11 : f32 to vector<16x8xf32>
    %10 = arith.mulf %8, %9 : vector<16x8xf32>
    %cst_12 = arith.constant dense<0xFF800000> : vector<16xf32>
    %11 = vector.multi_reduction <maximumf>, %10, %cst_12 [1] : vector<16x8xf32> to vector<16xf32>
    %12 = vector.shape_cast %11 : vector<16xf32> to vector<16x1xf32>
    %13 = vector.broadcast %12 : vector<16x1xf32> to vector<16x8xf32>
    %14 = arith.subf %10, %13 : vector<16x8xf32>
    %15 = math.exp %14 : vector<16x8xf32>
    %cst_13 = arith.constant dense<0.000000e+00> : vector<16xf32>
    %16 = vector.multi_reduction <add>, %15, %cst_13 [1] : vector<16x8xf32> to vector<16xf32>
    %17 = vector.shape_cast %16 : vector<16xf32> to vector<16x1xf32>
    %18 = tpu.reciprocal %17 : vector<16x1xf32> -> vector<16x1xf32>
    %19 = vector.broadcast %18 : vector<16x1xf32> to vector<16x8xf32>
    %20 = arith.mulf %15, %19 : vector<16x8xf32>
    %cst_14 = arith.constant dense<0.000000e+00> : vector<16x64xf32>
    %21 = tpu.matmul %20, %3, %cst_14 {dimension_numbers = #tpu.dot_dimension_numbers<[1], [0], [0], [1], [0, 0, 1, 1], [], []>} : vector<16x8xf32>, vector<8x64xf32>, vector<16x64xf32> -> vector<16x64xf32>
    %c0_15 = arith.constant 0 : index
    %c0_16 = arith.constant 0 : index
    %c0_17 = arith.constant 0 : index
    %22 = vector.load %arg6[%c0_15, %c0_16, %c0_17] : memref<1x16x64xf32, #tpu.memory_space<vmem>>, vector<1x16x64xf32>
    %23 = vector.shape_cast %22 : vector<1x16x64xf32> to vector<16x64xf32>
    %24 = vector.shape_cast %21 : vector<16x64xf32> to vector<1x16x64xf32>
    tpu.vector_store %arg6[%c0_15, %c0_16, %c0_17], %24 {strides = array<i32>} : memref<1x16x64xf32, #tpu.memory_space<vmem>>, vector<1x16x64xf32>,
    %c0_18 = arith.constant 0 : index
    %c0_19 = arith.constant 0 : index
    %c0_20 = arith.constant 0 : index
    %25 = vector.load %arg7[%c0_18, %c0_19, %c0_20] : memref<1x16x8xf32, #tpu.memory_space<vmem>>, vector<1x16x8xf32>
    %26 = vector.shape_cast %25 : vector<1x16x8xf32> to vector<16x8xf32>
    %27 = vector.shape_cast %20 : vector<16x8xf32> to vector<1x16x8xf32>
    tpu.vector_store %arg7[%c0_18, %c0_19, %c0_20], %27 {strides = array<i32>} : memref<1x16x8xf32, #tpu.memory_space<vmem>>, vector<1x16x8xf32>,
    return
  }
  func.func @transform_0(%arg0: i32, %arg1: i32) -> (i32, i32, i32) {
    %c0_i32 = arith.constant 0 : i32
    %c0_i32_0 = arith.constant 0 : i32
    return %arg0, %arg1, %c0_i32 : i32, i32, i32
  }
  func.func @transform_1(%arg0: i32, %arg1: i32) -> (i32, i32, i32) {
    %c0_i32 = arith.constant 0 : i32
    %c0_i32_0 = arith.constant 0 : i32
    %c0_i32_1 = arith.constant 0 : i32
    return %arg0, %c0_i32, %c0_i32_0 : i32, i32, i32
  }
  func.func @transform_2(%arg0: i32, %arg1: i32) -> (i32, i32) {
    %c0_i32 = arith.constant 0 : i32
    %c0_i32_0 = arith.constant 0 : i32
    %c0_i32_1 = arith.constant 0 : i32
    return %c0_i32, %c0_i32_0 : i32, i32
  }
  func.func @transform_3(%arg0: i32, %arg1: i32) -> (i32, i32) {
    %c0_i32 = arith.constant 0 : i32
    %c0_i32_0 = arith.constant 0 : i32
    %c0_i32_1 = arith.constant 0 : i32
    return %c0_i32, %c0_i32_0 : i32, i32
  }
  func.func @transform_4(%arg0: i32, %arg1: i32) -> (i32, i32, i32) {
    %c0_i32 = arith.constant 0 : i32
    %c0_i32_0 = arith.constant 0 : i32
    return %arg0, %arg1, %c0_i32 : i32, i32, i32
  }
  func.func @transform_5(%arg0: i32, %arg1: i32) -> (i32, i32, i32) {
    %c0_i32 = arith.constant 0 : i32
    %c0_i32_0 = arith.constant 0 : i32
    return %arg0, %arg1, %c0_i32 : i32, i32, i32
  }
}

</mosaic_0001>

<llo_original>
// kernel: tpu_custom_call.1
$region0: #{tpu_custom_call.1}
  #allocation0 [shape = 'u32[]', space=smem, size = 0x4, offset = 0x4, fixed_abs, tag = 'smem constant byte address 0x4 - core index']
  #allocation1 [shape = 'u32[144,128]{1,0:T(1,128)}', space=vmem, size = 0x12000, scoped, tag = 'internal scratch']
  %s0 = inlined_call_operand.hbm [shape: f32[2,16,32], index: 0, kind: input, shape index: {}]
  %s1 = inlined_call_operand.hbm [shape: f32[2,8,64], index: 1, kind: input, shape index: {}]
  %s2 = inlined_call_operand.hbm [shape: f32[32,64], index: 2, kind: input, shape index: {}]
  %s3 = inlined_call_operand.hbm [shape: f32[64,64], index: 3, kind: input, shape index: {}]
  %s4 = inlined_call_operand.hbm [shape: f32[2,16,64], index: 4, kind: output, shape index: {0}]
  %s5 = inlined_call_operand.vmem [shape: f32[2,16,8], index: 5, kind: output, shape index: {1}]
  %6 = xla_tuple %s4, %s5
  %s7 = sld [smem:[#allocation0]]
  $region73: #{tpu_custom_call.1} parent=0
    _
  %s9 = ssub.s32 1, %s7
  %s10 = scalar_select 0, %s9, %s7
  $region1: #{tpu_custom_call.1} parent=0
    #allocation2 [shape = 'u8[16384]{0}', space=vmem, size = 0x4000, scoped, tag = 'input window, operand 0']
    #allocation3 [shape = 's32[2]{0}', space=sflag, size = 0x8, scoped, tag = 'scoped memory for tpu_custom_call.1']
    #allocation4 [shape = 's32[2]{0}', space=sflag, size = 0x8, scoped, tag = 'scoped memory for tpu_custom_call.1']
    #allocation5 [shape = 'u8[8192]{0}', space=vmem, size = 0x2000, scoped, tag = 'input window, operand 1']
    #allocation6 [shape = 's32[2]{0}', space=sflag, size = 0x8, scoped, tag = 'scoped memory for tpu_custom_call.1']
    #allocation7 [shape = 'u8[16384]{0}', space=vmem, size = 0x4000, scoped, tag = 'input window, operand 2, single buffered']
    #allocation8 [shape = 'u8[32768]{0}', space=vmem, size = 0x8000, scoped, tag = 'input window, operand 3, single buffered']
    #allocation9 [shape = 's32[1]{0}', space=sflag, size = 0x4, scoped, tag = 'scoped memory for tpu_custom_call.1']
    #allocation10 [shape = 'u8[16384]{0}', space=vmem, size = 0x4000, scoped, tag = 'output window, operand 0']
    %11 = vsyncpa [#allocation3], 0
    %s12 = scalar_lea.sflag [#allocation3], 1
    %13 = vsyncpa %s12, 0
    %14 = vsyncpa [#allocation6], 0
    %s15 = scalar_lea.sflag [#allocation6], 1
    %16 = vsyncpa %s15, 0
    %17 = vsyncpa [#allocation9], 0
    %18 = vsyncpa [#allocation4], 0
    %s19 = scalar_lea.sflag [#allocation4], 1
    %20 = vsyncpa %s19, 0
    loop: start=0, step=1, limit=4
    $region2: #{tpu_custom_call.1} parent=1 // loop_pre_header
      _
    $region3: #{tpu_custom_call.1} parent=1 // loop_header
      %s22 = sphi 0, %s26
      %p23 = scmp.ge.s32.totalorder %s22, 4
      %s29 = sphi 0, %s41
      %s30 = sphi 0, %s37
      %s31 = sphi 0, %s29
      %s32 = sphi 0, %s30
      %s33 = sphi 0, %s31
      %s34 = sphi 0, %s32
      %s46 = sphi 0, %s48
      %s49 = sphi 0, %s46
      %s50 = sphi 0, %s49
      %s66 = sphi 0, %s50
      %s72 = sphi 0, %s74
      %s75 = sphi 0, %s72
      %s76 = sphi 0, %s75
      %s92 = sphi 0, %s76
      %s96 = sphi 0, %s96
      %s98 = sphi 0, %s96
      %s99 = sphi 0, %s98
      %s113 = sphi 0, %s99
      %s117 = sphi 0, %s117
      %s119 = sphi 0, %s117
      %s120 = sphi 0, %s119
      %s134 = sphi 0, %s120
      %s142 = sphi 0, %s144
      %s145 = sphi 0, %s142
      %s146 = sphi 0, %s145
      %s162 = sphi 0, %s146
      %s170 = sphi 0, %s172
      %s173 = sphi 0, %s170
      %s174 = sphi 0, %s173
      %s190 = sphi 0, %s174
    $region4: #{tpu_custom_call.1} parent=1 // loop_header_branch
      %25 = sbr.rel (%p23) target = $region8
    $region5: #{tpu_custom_call.1} parent=1 // loop_body
      %s27 = ssub.s32 %s22, 1
      %s28 = ssub.s32 %s22, 2
      %s35 = sadd.s32 1, %s30
      %p36 = scmp.ge.s32.totalorder %s35, 1
      %s37 = scalar_select %p36, 0, %s35
      %s38 = sadd.s32 1, %s29
      %s39 = scalar_select %p36, %s38, %s29
      %p40 = scmp.ge.s32.totalorder %s39, 2
      %s41 = scalar_select %p40, 0, %s39
      %s42 = ssub.s32 %s29, %s41
      %s43 = ssub.s32 %s30, %s37
      %s44 = sor.u32 %s42, %s43
      %p45 = scmp.eq.s32.totalorder %s44, 0
      %s47 = sadd.s32 %s46, 1
      %s48 = scalar_select %p45, %s46, %s47
      %p51 = pneg %p45
      %p52 = scmp.eq.s32.totalorder %s22, 1
      %p53 = por %p51, %p52
      %p54 = scmp.ne.s32.totalorder %s46, %s49
      %p55 = scmp.eq.s32.totalorder %s22, 0
      %p56 = por %p54, %p55
      %p57 = scmp.ne.s32.totalorder %s46, %s49
      %p58 = scmp.eq.s32.totalorder %s27, 1
      %p59 = por %p57, %p58
      %p60 = scmp.ne.s32.totalorder %s49, %s50
      %p61 = scmp.eq.s32.totalorder %s27, 0
      %p62 = por %p60, %p61
      %p63 = scmp.ne.s32.totalorder %s49, %s50
      %p64 = scmp.eq.s32.totalorder %s28, 1
      %p65 = por %p63, %p64
      %p67 = scmp.ne.s32.totalorder %s50, %s66
      %p68 = scmp.eq.s32.totalorder %s28, 0
      %p69 = por %p67, %p68
      %s70 = ssub.s32 %s29, %s41
      %p71 = scmp.eq.s32.totalorder %s70, 0
      %s73 = sadd.s32 %s72, 1
      %s74 = scalar_select %p71, %s72, %s73
      %p77 = pneg %p71
      %p78 = scmp.eq.s32.totalorder %s22, 1
      %p79 = por %p77, %p78
      %p80 = scmp.ne.s32.totalorder %s72, %s75
      %p81 = scmp.eq.s32.totalorder %s22, 0
      %p82 = por %p80, %p81
      %p83 = scmp.ne.s32.totalorder %s72, %s75
      %p84 = scmp.eq.s32.totalorder %s27, 1
      %p85 = por %p83, %p84
      %p86 = scmp.ne.s32.totalorder %s75, %s76
      %p87 = scmp.eq.s32.totalorder %s27, 0
      %p88 = por %p86, %p87
      %p89 = scmp.ne.s32.totalorder %s75, %s76
      %p90 = scmp.eq.s32.totalorder %s28, 1
      %p91 = por %p89, %p90
      %p93 = scmp.ne.s32.totalorder %s76, %s92
      %p94 = scmp.eq.s32.totalorder %s28, 0
      %p95 = por %p93, %p94
      %s97 = sadd.s32 %s96, 1
      %p100 = scmp.eq.s32.totalorder %s22, 1
      %p101 = scmp.ne.s32.totalorder %s96, %s98
      %p102 = scmp.eq.s32.totalorder %s22, 0
      %p103 = por %p101, %p102
      %p104 = scmp.ne.s32.totalorder %s96, %s98
      %p105 = scmp.eq.s32.totalorder %s27, 1
      %p106 = por %p104, %p105
      %p107 = scmp.ne.s32.totalorder %s98, %s99
      %p108 = scmp.eq.s32.totalorder %s27, 0
      %p109 = por %p107, %p108
      %p110 = scmp.ne.s32.totalorder %s98, %s99
      %p111 = scmp.eq.s32.totalorder %s28, 1
      %p112 = por %p110, %p111
      %p114 = scmp.ne.s32.totalorder %s99, %s113
      %p115 = scmp.eq.s32.totalorder %s28, 0
      %p116 = por %p114, %p115
      %s118 = sadd.s32 %s117, 1
      %p121 = scmp.eq.s32.totalorder %s22, 1
      %p122 = scmp.ne.s32.totalorder %s117, %s119
      %p123 = scmp.eq.s32.totalorder %s22, 0
      %p124 = por %p122, %p123
      %p125 = scmp.ne.s32.totalorder %s117, %s119
      %p126 = scmp.eq.s32.totalorder %s27, 1
      %p127 = por %p125, %p126
      %p128 = scmp.ne.s32.totalorder %s119, %s120
      %p129 = scmp.eq.s32.totalorder %s27, 0
      %p130 = por %p128, %p129
      %p131 = scmp.ne.s32.totalorder %s119, %s120
      %p132 = scmp.eq.s32.totalorder %s28, 1
      %p133 = por %p131, %p132
      %p135 = scmp.ne.s32.totalorder %s120, %s134
      %p136 = scmp.eq.s32.totalorder %s28, 0
      %p137 = por %p135, %p136
      %s138 = ssub.s32 %s29, %s41
      %s139 = ssub.s32 %s30, %s37
      %s140 = sor.u32 %s138, %s139
      %p141 = scmp.eq.s32.totalorder %s140, 0
      %s143 = sadd.s32 %s142, 1
      %s144 = scalar_select %p141, %s142, %s143
      %p147 = pneg %p141
      %p148 = scmp.eq.s32.totalorder %s22, 1
      %p149 = por %p147, %p148
      %p150 = scmp.ne.s32.totalorder %s142, %s145
      %p151 = scmp.eq.s32.totalorder %s22, 0
      %p152 = por %p150, %p151
      %p153 = scmp.ne.s32.totalorder %s142, %s145
      %p154 = scmp.eq.s32.totalorder %s27, 1
      %p155 = por %p153, %p154
      %p156 = scmp.ne.s32.totalorder %s145, %s146
      %p157 = scmp.eq.s32.totalorder %s27, 0
      %p158 = por %p156, %p157
      %p159 = scmp.ne.s32.totalorder %s145, %s146
      %p160 = scmp.eq.s32.totalorder %s28, 1
      %p161 = por %p159, %p160
      %p163 = scmp.ne.s32.totalorder %s146, %s162
      %p164 = scmp.eq.s32.totalorder %s28, 0
      %p165 = por %p163, %p164
      %s166 = ssub.s32 %s29, %s41
      %s167 = ssub.s32 %s30, %s37
      %s168 = sor.u32 %s166, %s167
      %p169 = scmp.eq.s32.totalorder %s168, 0
      %s171 = sadd.s32 %s170, 1
      %s172 = scalar_select %p169, %s170, %s171
      %p175 = pneg %p169
      %p176 = scmp.eq.s32.totalorder %s22, 1
      %p177 = por %p175, %p176
      %p178 = scmp.ne.s32.totalorder %s170, %s173
      %p179 = scmp.eq.s32.totalorder %s22, 0
      %p180 = por %p178, %p179
      %p181 = scmp.ne.s32.totalorder %s170, %s173
      %p182 = scmp.eq.s32.totalorder %s27, 1
      %p183 = por %p181, %p182
      %p184 = scmp.ne.s32.totalorder %s173, %s174
      %p185 = scmp.eq.s32.totalorder %s27, 0
      %p186 = por %p184, %p185
      %p187 = scmp.ne.s32.totalorder %s173, %s174
      %p188 = scmp.eq.s32.totalorder %s28, 1
      %p189 = por %p187, %p188
      %p191 = scmp.ne.s32.totalorder %s174, %s190
      %p192 = scmp.eq.s32.totalorder %s28, 0
      %p193 = por %p191, %p192
      %p194 = scmp.le.s32.totalorder 1, %s22
      %p195 = scmp.lt.s32.totalorder %s22, 3
      %p196 = pnand %p194, %p195
      %p197 = pneg %p196
      // Predicated region
      $region9: #{tpu_custom_call.1} parent=5 // pred_check
        _
      $region10: #{tpu_custom_call.1} parent=5 // pred_check_branch
        %199 = sbr.rel (%p196) target = $region12
      $region11: #{tpu_custom_call.1} parent=5 // pred_region
        %s200 = ssub.s32 %s22, 1
        // Predicated region
        $region13: #{tpu_custom_call.1} parent=11 // pred_check
          %p201 = pneg %p109
        $region14: #{tpu_custom_call.1} parent=11 // pred_check_branch
          %203 = sbr.rel (%p201) target = $region16
        $region15: #{tpu_custom_call.1} parent=11 // pred_region
          %s205 = ssub.s32 512, 512
          %206 = vsyncadd [#allocation6], %s205
          %s207 = sshll.u32 [#allocation7], 4
          %s208 = int_to_ptr.vmem [resolvable:$true] %s207
          %213 = dma.hbm_to_vmem [thread:$0]  %s2, 512, %s208, [#allocation6], 128, 128, 8
        $region16: #{tpu_custom_call.1} parent=11 // pred_fallthru
          _
        // Predicated region
        $region17: #{tpu_custom_call.1} parent=11 // pred_check
          %p214 = pneg %p130
        $region18: #{tpu_custom_call.1} parent=11 // pred_check_branch
          %216 = sbr.rel (%p214) target = $region20
        $region19: #{tpu_custom_call.1} parent=11 // pred_region
          %s218 = ssub.s32 1024, 1024
          %219 = vsyncadd [#allocation9], %s218
          %s220 = sshll.u32 [#allocation8], 4
          %s221 = int_to_ptr.vmem [resolvable:$true] %s220
          %226 = dma.hbm_to_vmem [thread:$0]  %s3, 1024, %s221, [#allocation9], 128, 128, 8
        $region20: #{tpu_custom_call.1} parent=11 // pred_fallthru
          _
      $region12: #{tpu_custom_call.1} parent=5 // pred_fallthru
        _
      %p227 = scmp.lt.s32.totalorder %s22, 2
      // Predicated region
      $region21: #{tpu_custom_call.1} parent=5 // pred_check
        %p228 = pneg %p227
      $region22: #{tpu_custom_call.1} parent=5 // pred_check_branch
        %230 = sbr.rel (%p228) target = $region24
      $region23: #{tpu_custom_call.1} parent=5 // pred_region
        // Predicated region
        $region25: #{tpu_custom_call.1} parent=23 // pred_check
          %p231 = pneg %p56
        $region26: #{tpu_custom_call.1} parent=23 // pred_check_branch
          %233 = sbr.rel (%p231) target = $region28
        $region27: #{tpu_custom_call.1} parent=23 // pred_region
          %s234 = sand.u32 %s46, 1
          %s235 = scalar_lea.sflag [#allocation3], %s234
          %s236 = sand.u32 %s46, 1
          %s237 = smul.addr %s236, 16
          %s238 = scalar_lea.vmem [#allocation2], %s237
          %s239 = smul.u32 2, %s30
          %s241 = ssub.s32 256, 256
          %242 = vsyncadd %s235, %s241
          %s243 = smul.addr %s29, 2
          %s244 = sadd.s32 %s239, %s243
          %s245 = smul.addr %s244, 128
          %s246 = scalar_lea.hbm %s0, %s245
          %s247 = sshll.u32 %s238, 4
          %s248 = int_to_ptr.vmem [resolvable:$true] %s247
          %253 = dma.hbm_to_vmem [thread:$0]  %s246, 256, %s248, %s235, 128, 128, 8
        $region28: #{tpu_custom_call.1} parent=23 // pred_fallthru
          _
        // Predicated region
        $region29: #{tpu_custom_call.1} parent=23 // pred_check
          %p254 = pneg %p82
        $region30: #{tpu_custom_call.1} parent=23 // pred_check_branch
          %256 = sbr.rel (%p254) target = $region32
        $region31: #{tpu_custom_call.1} parent=23 // pred_region
          %s257 = sand.u32 %s22, 1
          %s258 = scalar_lea.sflag [#allocation6], %s257
          %s259 = sand.u32 %s72, 1
          %s260 = smul.addr %s259, 8
          %s261 = scalar_lea.vmem [#allocation5], %s260
          %s263 = ssub.s32 128, 128
          %264 = vsyncadd %s258, %s263
          %s265 = smul.addr %s29, 128
          %s266 = scalar_lea.hbm %s1, %s265
          %s268 = sshll.u32 %s261, 4
          %s269 = int_to_ptr.vmem [resolvable:$true] %s268
          %271 = dma.hbm_to_vmem [thread:$0]  %s266, 128, %s269, %s258
        $region32: #{tpu_custom_call.1} parent=23 // pred_fallthru
          _
      $region24: #{tpu_custom_call.1} parent=5 // pred_fallthru
        _
      %p272 = scmp.le.s32.totalorder 1, %s22
      %p273 = scmp.lt.s32.totalorder %s22, 3
      %p274 = pnand %p272, %p273
      %p275 = pneg %p274
      // Predicated region
      $region33: #{tpu_custom_call.1} parent=5 // pred_check
        _
      $region34: #{tpu_custom_call.1} parent=5 // pred_check_branch
        %277 = sbr.rel (%p274) target = $region36
      $region35: #{tpu_custom_call.1} parent=5 // pred_region
        %s278 = ssub.s32 %s22, 1
        %s279 = sand.u32 %s49, 1
        %s280 = scalar_lea.sflag [#allocation3], %s279
        %s281 = sand.u32 %s49, 1
        %s282 = smul.addr %s281, 16
        %s283 = scalar_lea.vmem [#allocation2], %s282
        // Predicated region
        $region37: #{tpu_custom_call.1} parent=35 // pred_check
          %p284 = pneg %p62
        $region38: #{tpu_custom_call.1} parent=35 // pred_check_branch
          %286 = sbr.rel (%p284) target = $region40
        $region39: #{tpu_custom_call.1} parent=35 // pred_region
          %287 = dma.done %s280, 256
        $region40: #{tpu_custom_call.1} parent=35 // pred_fallthru
          _
        %s288 = sand.u32 %s27, 1
        %s289 = scalar_lea.sflag [#allocation6], %s288
        %s290 = sand.u32 %s75, 1
        %s291 = smul.addr %s290, 8
        %s292 = scalar_lea.vmem [#allocation5], %s291
        // Predicated region
        $region41: #{tpu_custom_call.1} parent=35 // pred_check
          %p293 = pneg %p88
        $region42: #{tpu_custom_call.1} parent=35 // pred_check_branch
          %295 = sbr.rel (%p293) target = $region44
        $region43: #{tpu_custom_call.1} parent=35 // pred_region
          %296 = dma.done %s289, 128
        $region44: #{tpu_custom_call.1} parent=35 // pred_fallthru
          _
        // Predicated region
        $region45: #{tpu_custom_call.1} parent=35 // pred_check
          %p297 = pneg %p109
        $region46: #{tpu_custom_call.1} parent=35 // pred_check_branch
          %299 = sbr.rel (%p297) target = $region48
        $region47: #{tpu_custom_call.1} parent=35 // pred_region
          %300 = dma.done [#allocation6], 512
        $region48: #{tpu_custom_call.1} parent=35 // pred_fallthru
          _
        // Predicated region
        $region49: #{tpu_custom_call.1} parent=35 // pred_check
          %p301 = pneg %p130
        $region50: #{tpu_custom_call.1} parent=35 // pred_check_branch
          %303 = sbr.rel (%p301) target = $region52
        $region51: #{tpu_custom_call.1} parent=35 // pred_region
          %304 = dma.done [#allocation9], 1024
        $region52: #{tpu_custom_call.1} parent=35 // pred_fallthru
          _
        %s305 = sand.u32 %s49, 1
        %s306 = scalar_lea.sflag [#allocation3], %s305
        %s307 = sand.u32 %s49, 1
        %s308 = smul.addr %s307, 16
        %s309 = scalar_lea.vmem [#allocation2], %s308
        %p310 = pneg %p62
        %p311 = pneg %p59
        %s312 = sand.u32 %s27, 1
        %s313 = scalar_lea.sflag [#allocation6], %s312
        %s314 = sand.u32 %s75, 1
        %s315 = smul.addr %s314, 8
        %s316 = scalar_lea.vmem [#allocation5], %s315
        %p317 = pneg %p88
        %p318 = pneg %p85
        %p319 = pneg %p109
        %p320 = pneg %p106
        %p321 = pneg %p130
        %p322 = pneg %p127
        %p323 = pneg %p158
        %p324 = pneg %p155
        %s325 = sand.u32 %s145, 1
        %s326 = scalar_lea.sflag [#allocation4], %s325
        %s327 = sand.u32 %s145, 1
        %s328 = smul.addr %s327, 16
        %s329 = scalar_lea.vmem [#allocation10], %s328
        %p330 = pneg %p186
        %p331 = pneg %p183
        %s332 = smul.u32 2, %s32
        %p333 = scmp.lt.s32.totalorder %s31, 1
        %s334 = scalar_select %p333, %s31, 1
        %p335 = scmp.lt.s32.totalorder %s332, 1
        %s336 = scalar_select %p335, %s332, 1
        %s337 = smul.addr %s334, 2
        %s338 = sadd.s32 %s336, %s337
        %s339 = smul.addr %s338, 8
        %s340 = scalar_lea.vmem %s5, %s339
        %s341 = smul.u32 2, %s32
        %s342 = smul.u32 2, %s32
        %s343 = smul.u32 2, %s32
        %p344 = scmp.lt.s32.totalorder %s31, 1
        %s345 = scalar_select %p344, %s31, 1
        %p346 = scmp.lt.s32.totalorder %s343, 1
        %s347 = scalar_select %p346, %s343, 1
        %s348 = smul.addr %s345, 2
        %s349 = sadd.s32 %s347, %s348
        %s350 = smul.addr %s349, 8
        %s351 = scalar_lea.vmem %s5, %s350
        %s352 = smul.u32 2, %s32
        %v353 = vld [vmem:[%s283] sm:$0xff]
        %v354 = vld [vmem:[%s283 + $0x8] sm:$0xff]
        %v355 = vld [vmem:[%s292] sm:$0xff]
        %v356 = vld [vmem:[#allocation7] sm:$0xff]
        %v357 = vld [vmem:[#allocation7 + $0x8] sm:$0xff]
        %v358 = vld [vmem:[#allocation7 + $0x10] sm:$0xff]
        %v359 = vld [vmem:[#allocation7 + $0x18] sm:$0xff]
        %vm360 = vcmask 261120
        %v362 = vsel %vm360, %v353, 0
        %v365 = vsel %vm360, %v354, 0
        %367 = vmatprep.subr.mxu0 0.0
        %368 = vmatpush1.msra.mxu0 0.0
        %369 = vmatprep.subr.mxu0 0.0
        %370 = vmatpush1.msra.mxu0 0.0
        %371 = vmatprep.subr.mxu0 0.0
        %372 = vmatpush1.msra.mxu0 0.0
        %373 = vmatprep.subr.mxu0 0.0
        %374 = vmatpush1.msra.mxu0 0.0
        %375 = vmatprep.subr.mxu0 0.0
        %376 = vmatpush1.msra.mxu0 0.0
        %377 = vmatprep.subr.mxu0 0.0
        %378 = vmatpush1.msra.mxu0 0.0
        %379 = vmatprep.subr.mxu0 0.0
        %380 = vmatpush1.msra.mxu0 0.0
        %381 = vmatprep.subr.mxu0 0.0
        %382 = vmatpush1.msra.mxu0 0.0
        %383 = vmatprep.subr.mxu0 0.0
        %384 = vmatpush1.msra.mxu0 0.0
        %385 = vmatprep.subr.mxu0 0.0
        %386 = vmatpush1.msra.mxu0 0.0
        %387 = vmatprep.subr.mxu0 0.0
        %388 = vmatpush1.msra.mxu0 0.0
        %389 = vmatprep.subr.mxu0 0.0
        %390 = vmatpush1.msra.mxu0 0.0
        %391 = vmatprep.subr.mxu0 0.0
        %392 = vmatpush1.msra.mxu0 %v359
        %393 = vmatprep.subr.mxu0 0.0
        %394 = vmatpush1.msra.mxu0 %v358
        %395 = vmatprep.subr.mxu0 0.0
        %396 = vmatpush1.msra.mxu0 %v357
        %397 = vmatprep.subr.mxu0 0.0
        %398 = vmatpush1.msra.mxu0 %v356
        %399 = vmatprep.subr.mxu0 0.0
        %400 = vmatpush2.msra.mxu0 0.0
        %401 = vmatprep.subr.mxu0 0.0
        %402 = vmatpush2.msra.mxu0 0.0
        %403 = vmatprep.subr.mxu0 0.0
        %404 = vmatpush2.msra.mxu0 0.0
        %405 = vmatprep.subr.mxu0 0.0
        %406 = vmatpush2.msra.mxu0 0.0
        %407 = vmatprep.subr.mxu0 0.0
        %408 = vmatpush2.msra.mxu0 0.0
        %409 = vmatprep.subr.mxu0 0.0
        %410 = vmatpush2.msra.mxu0 0.0
        %411 = vmatprep.subr.mxu0 0.0
        %412 = vmatpush2.msra.mxu0 0.0
        %413 = vmatprep.subr.mxu0 0.0
        %414 = vmatpush2.msra.mxu0 0.0
        %415 = vmatprep.subr.mxu0 0.0
        %416 = vmatpush2.msra.mxu0 0.0
        %417 = vmatprep.subr.mxu0 0.0
        %418 = vmatpush2.msra.mxu0 0.0
        %419 = vmatprep.subr.mxu0 0.0
        %420 = vmatpush2.msra.mxu0 0.0
        %421 = vmatprep.subr.mxu0 0.0
        %422 = vmatpush2.msra.mxu0 0.0
        %423 = vmatprep.subr.mxu0 0.0
        %424 = vmatpush2.msra.mxu0 0.0
        %425 = vmatprep.subr.mxu0 0.0
        %426 = vmatpush2.msra.mxu0 0.0
        %427 = vmatprep.subr.mxu0 0.0
        %428 = vmatpush2.msra.mxu0 0.0
        %429 = vmatprep.subr.mxu0 0.0
        %430 = vmatpush2.msra.mxu0 0.0
        %431 = vmatprep.mubr.f32.mxu0 0.0
        %432 = vmatmul.mubr.f32.gmra.mxu0 %v362
        %v433 = vpop.f32.mrf.mxu0
        %v434 = vadd.f32 0.0, %v433
        %v435 = vpop.f32.mrf.mxu0
        %436 = vmatprep.mubr.f32.mxu0 0.0
        %437 = vmatmul.mubr.f32.gmra.mxu0 %v365
        %v438 = vpop.f32.mrf.mxu0
        %v439 = vadd.f32 0.0, %v438
        %v440 = vpop.f32.mrf.mxu0
        %441 = vdwg.mxu0
        %v442 = vld [vmem:[#allocation8] sm:$0xff]
        %v443 = vld [vmem:[#allocation8 + $0x8] sm:$0xff]
        %v444 = vld [vmem:[#allocation8 + $0x10] sm:$0xff]
        %v445 = vld [vmem:[#allocation8 + $0x18] sm:$0xff]
        %v446 = vld [vmem:[#allocation8 + $0x20] sm:$0xff]
        %v447 = vld [vmem:[#allocation8 + $0x28] sm:$0xff]
        %v448 = vld [vmem:[#allocation8 + $0x30] sm:$0xff]
        %v449 = vld [vmem:[#allocation8 + $0x38] sm:$0xff]
        %vm450 = vcmask 523264
        %v452 = vsel %vm450, %v355, 0
        %454 = vmatprep.subr.mxu0 0.0
        %455 = vmatpush1.msra.mxu0 0.0
        %456 = vmatprep.subr.mxu0 0.0
        %457 = vmatpush1.msra.mxu0 0.0
        %458 = vmatprep.subr.mxu0 0.0
        %459 = vmatpush1.msra.mxu0 0.0
        %460 = vmatprep.subr.mxu0 0.0
        %461 = vmatpush1.msra.mxu0 0.0
        %462 = vmatprep.subr.mxu0 0.0
        %463 = vmatpush1.msra.mxu0 0.0
        %464 = vmatprep.subr.mxu0 0.0
        %465 = vmatpush1.msra.mxu0 0.0
        %466 = vmatprep.subr.mxu0 0.0
        %467 = vmatpush1.msra.mxu0 0.0
        %468 = vmatprep.subr.mxu0 0.0
        %469 = vmatpush1.msra.mxu0 0.0
        %470 = vmatprep.subr.mxu0 0.0
        %471 = vmatpush1.msra.mxu0 %v449
        %472 = vmatprep.subr.mxu0 0.0
        %473 = vmatpush1.msra.mxu0 %v448
        %474 = vmatprep.subr.mxu0 0.0
        %475 = vmatpush1.msra.mxu0 %v447
        %476 = vmatprep.subr.mxu0 0.0
        %477 = vmatpush1.msra.mxu0 %v446
        %478 = vmatprep.subr.mxu0 0.0
        %479 = vmatpush1.msra.mxu0 %v445
        %480 = vmatprep.subr.mxu0 0.0
        %481 = vmatpush1.msra.mxu0 %v444
        %482 = vmatprep.subr.mxu0 0.0
        %483 = vmatpush1.msra.mxu0 %v443
        %484 = vmatprep.subr.mxu0 0.0
        %485 = vmatpush1.msra.mxu0 %v442
        %486 = vmatprep.subr.mxu0 0.0
        %487 = vmatpush2.msra.mxu0 0.0
        %488 = vmatprep.subr.mxu0 0.0
        %489 = vmatpush2.msra.mxu0 0.0
        %490 = vmatprep.subr.mxu0 0.0
        %491 = vmatpush2.msra.mxu0 0.0
        %492 = vmatprep.subr.mxu0 0.0
        %493 = vmatpush2.msra.mxu0 0.0
        %494 = vmatprep.subr.mxu0 0.0
        %495 = vmatpush2.msra.mxu0 0.0
        %496 = vmatprep.subr.mxu0 0.0
        %497 = vmatpush2.msra.mxu0 0.0
        %498 = vmatprep.subr.mxu0 0.0
        %499 = vmatpush2.msra.mxu0 0.0
        %500 = vmatprep.subr.mxu0 0.0
        %501 = vmatpush2.msra.mxu0 0.0
        %502 = vmatprep.subr.mxu0 0.0
        %503 = vmatpush2.msra.mxu0 0.0
        %504 = vmatprep.subr.mxu0 0.0
        %505 = vmatpush2.msra.mxu0 0.0
        %506 = vmatprep.subr.mxu0 0.0
        %507 = vmatpush2.msra.mxu0 0.0
        %508 = vmatprep.subr.mxu0 0.0
        %509 = vmatpush2.msra.mxu0 0.0
        %510 = vmatprep.subr.mxu0 0.0
        %511 = vmatpush2.msra.mxu0 0.0
        %512 = vmatprep.subr.mxu0 0.0
        %513 = vmatpush2.msra.mxu0 0.0
        %514 = vmatprep.subr.mxu0 0.0
        %515 = vmatpush2.msra.mxu0 0.0
        %516 = vmatprep.subr.mxu0 0.0
        %517 = vmatpush2.msra.mxu0 0.0
        %518 = vmatprep.mubr.f32.mxu0 0.0
        %519 = vmatmul.mubr.f32.gmra.mxu0 %v452
        %v520 = vpop.f32.mrf.mxu0
        %v521 = vadd.f32 0.0, %v520
        %v522 = vpop.f32.mrf.mxu0
        %523 = vdwg.mxu0
        %v525 = vsel %vm450, %v434, 0
        %v528 = vsel %vm450, %v439, 0
        %v531 = vsel %vm450, %v521, 0
        %533 = vmatprep.subr.mxu0 0.0
        %534 = vmatpush1.xpose.msra.mxu0 0.0
        %535 = vmatprep.subr.mxu0 0.0
        %536 = vmatpush1.xpose.msra.mxu0 0.0
        %537 = vmatprep.subr.mxu0 0.0
        %538 = vmatpush1.xpose.msra.mxu0 0.0
        %539 = vmatprep.subr.mxu0 0.0
        %540 = vmatpush1.xpose.msra.mxu0 0.0
        %541 = vmatprep.subr.mxu0 0.0
        %542 = vmatpush1.xpose.msra.mxu0 0.0
        %543 = vmatprep.subr.mxu0 0.0
        %544 = vmatpush1.xpose.msra.mxu0 0.0
        %545 = vmatprep.subr.mxu0 0.0
        %546 = vmatpush1.xpose.msra.mxu0 0.0
        %547 = vmatprep.subr.mxu0 0.0
        %548 = vmatpush1.xpose.msra.mxu0 0.0
        %549 = vmatprep.subr.mxu0 0.0
        %550 = vmatpush1.xpose.msra.mxu0 0.0
        %551 = vmatprep.subr.mxu0 0.0
        %552 = vmatpush1.xpose.msra.mxu0 0.0
        %553 = vmatprep.subr.mxu0 0.0
        %554 = vmatpush1.xpose.msra.mxu0 0.0
        %555 = vmatprep.subr.mxu0 0.0
        %556 = vmatpush1.xpose.msra.mxu0 0.0
        %557 = vmatprep.subr.mxu0 0.0
        %558 = vmatpush1.xpose.msra.mxu0 0.0
        %559 = vmatprep.subr.mxu0 0.0
        %560 = vmatpush1.xpose.msra.mxu0 0.0
        %561 = vmatprep.subr.mxu0 0.0
        %562 = vmatpush1.xpose.msra.mxu0 0.0
        %563 = vmatprep.subr.mxu0 0.0
        %564 = vmatpush1.xpose.msra.mxu0 %v531
        %565 = vmatprep.subr.mxu0 0.0
        %566 = vmatpush2.xpose.msra.mxu0 0.0
        %567 = vmatprep.subr.mxu0 0.0
        %568 = vmatpush2.xpose.msra.mxu0 0.0
        %569 = vmatprep.subr.mxu0 0.0
        %570 = vmatpush2.xpose.msra.mxu0 0.0
        %571 = vmatprep.subr.mxu0 0.0
        %572 = vmatpush2.xpose.msra.mxu0 0.0
        %573 = vmatprep.subr.mxu0 0.0
        %574 = vmatpush2.xpose.msra.mxu0 0.0
        %575 = vmatprep.subr.mxu0 0.0
        %576 = vmatpush2.xpose.msra.mxu0 0.0
        %577 = vmatprep.subr.mxu0 0.0
        %578 = vmatpush2.xpose.msra.mxu0 0.0
        %579 = vmatprep.subr.mxu0 0.0
        %580 = vmatpush2.xpose.msra.mxu0 0.0
        %581 = vmatprep.subr.mxu0 0.0
        %582 = vmatpush2.xpose.msra.mxu0 0.0
        %583 = vmatprep.subr.mxu0 0.0
        %584 = vmatpush2.xpose.msra.mxu0 0.0
        %585 = vmatprep.subr.mxu0 0.0
        %586 = vmatpush2.xpose.msra.mxu0 0.0
        %587 = vmatprep.subr.mxu0 0.0
        %588 = vmatpush2.xpose.msra.mxu0 0.0
        %589 = vmatprep.subr.mxu0 0.0
        %590 = vmatpush2.xpose.msra.mxu0 0.0
        %591 = vmatprep.subr.mxu0 0.0
        %592 = vmatpush2.xpose.msra.mxu0 0.0
        %593 = vmatprep.subr.mxu0 0.0
        %594 = vmatpush2.xpose.msra.mxu0 0.0
        %595 = vmatprep.subr.mxu0 0.0
        %596 = vmatpush2.xpose.msra.mxu0 0.0
        %597 = vmatprep.mubr.f32.mxu0 0.0
        %598 = vmatmul.mubr.f32.gmra.mxu0 %v525
        %v599 = vpop.f32.mrf.mxu0
        %v600 = vadd.f32 0.0, %v599
        %v601 = vpop.f32.mrf.mxu0
        %602 = vmatprep.mubr.f32.mxu0 0.0
        %603 = vmatmul.mubr.f32.gmra.mxu0 %v528
        %v604 = vpop.f32.mrf.mxu0
        %v605 = vadd.f32 0.0, %v604
        %v606 = vpop.f32.mrf.mxu0
        %607 = vdwg.mxu0
        %v608 = vmul.f32 %v600, 0.125
        %v609 = vmul.f32 %v605, 0.125
        %vm610 = vcmask 64512
        %v611 = vsel %vm610, %v608, -inf
        %612 = vmax.xlane.f32.xlu0 %v611
        %v613 = vpop.xlane.xlu0 %612
        %v614 = vsel %vm610, %v609, -inf
        %615 = vmax.xlane.f32.xlu0 %v614
        %v616 = vpop.xlane.xlu0 %615
        %v617 = vsub.f32 %v608, %v613
        %v618 = vsub.f32 %v609, %v616
        %v619 = vmul.f32 %v617, 1.442695
        %v620 = vpow.pop %v619
        %v621 = vmul.f32 %v618, 1.442695
        %v622 = vpow.pop %v621
        %v623 = vsel %vm610, %v620, 0.0
        %624 = vadd.xlane.f32.xlu0 %v623
        %v625 = vpop.xlane.xlu0 %624
        %v626 = vsel %vm610, %v622, 0.0
        %627 = vadd.xlane.f32.xlu0 %v626
        %v628 = vpop.xlane.xlu0 %627
        %v629 = vrcp.pop %v625
        %v630 = vrcp.pop %v628
        %v631 = vmul.f32 %v620, %v629
        %v632 = vmul.f32 %v622, %v630
        %v634 = vsel %vm610, %v631, 0
        %v637 = vsel %vm610, %v632, 0
        %639 = vmatprep.subr.mxu0 0.0
        %640 = vmatpush1.msra.mxu0 0.0
        %641 = vmatprep.subr.mxu0 0.0
        %642 = vmatpush1.msra.mxu0 0.0
        %643 = vmatprep.subr.mxu0 0.0
        %644 = vmatpush1.msra.mxu0 0.0
        %645 = vmatprep.subr.mxu0 0.0
        %646 = vmatpush1.msra.mxu0 0.0
        %647 = vmatprep.subr.mxu0 0.0
        %648 = vmatpush1.msra.mxu0 0.0
        %649 = vmatprep.subr.mxu0 0.0
        %650 = vmatpush1.msra.mxu0 0.0
        %651 = vmatprep.subr.mxu0 0.0
        %652 = vmatpush1.msra.mxu0 0.0
        %653 = vmatprep.subr.mxu0 0.0
        %654 = vmatpush1.msra.mxu0 0.0
        %655 = vmatprep.subr.mxu0 0.0
        %656 = vmatpush1.msra.mxu0 0.0
        %657 = vmatprep.subr.mxu0 0.0
        %658 = vmatpush1.msra.mxu0 0.0
        %659 = vmatprep.subr.mxu0 0.0
        %660 = vmatpush1.msra.mxu0 0.0
        %661 = vmatprep.subr.mxu0 0.0
        %662 = vmatpush1.msra.mxu0 0.0
        %663 = vmatprep.subr.mxu0 0.0
        %664 = vmatpush1.msra.mxu0 0.0
        %665 = vmatprep.subr.mxu0 0.0
        %666 = vmatpush1.msra.mxu0 0.0
        %667 = vmatprep.subr.mxu0 0.0
        %668 = vmatpush1.msra.mxu0 0.0
        %669 = vmatprep.subr.mxu0 0.0
        %670 = vmatpush1.msra.mxu0 %v355
        %671 = vmatprep.subr.mxu0 0.0
        %672 = vmatpush2.msra.mxu0 0.0
        %673 = vmatprep.subr.mxu0 0.0
        %674 = vmatpush2.msra.mxu0 0.0
        %675 = vmatprep.subr.mxu0 0.0
        %676 = vmatpush2.msra.mxu0 0.0
        %677 = vmatprep.subr.mxu0 0.0
        %678 = vmatpush2.msra.mxu0 0.0
        %679 = vmatprep.subr.mxu0 0.0
        %680 = vmatpush2.msra.mxu0 0.0
        %681 = vmatprep.subr.mxu0 0.0
        %682 = vmatpush2.msra.mxu0 0.0
        %683 = vmatprep.subr.mxu0 0.0
        %684 = vmatpush2.msra.mxu0 0.0
        %685 = vmatprep.subr.mxu0 0.0
        %686 = vmatpush2.msra.mxu0 0.0
        %687 = vmatprep.subr.mxu0 0.0
        %688 = vmatpush2.msra.mxu0 0.0
        %689 = vmatprep.subr.mxu0 0.0
        %690 = vmatpush2.msra.mxu0 0.0
        %691 = vmatprep.subr.mxu0 0.0
        %692 = vmatpush2.msra.mxu0 0.0
        %693 = vmatprep.subr.mxu0 0.0
        %694 = vmatpush2.msra.mxu0 0.0
        %695 = vmatprep.subr.mxu0 0.0
        %696 = vmatpush2.msra.mxu0 0.0
        %697 = vmatprep.subr.mxu0 0.0
        %698 = vmatpush2.msra.mxu0 0.0
        %699 = vmatprep.subr.mxu0 0.0
        %700 = vmatpush2.msra.mxu0 0.0
        %701 = vmatprep.subr.mxu0 0.0
        %702 = vmatpush2.msra.mxu0 0.0
        %703 = vmatprep.mubr.f32.mxu0 0.0
        %704 = vmatmul.mubr.f32.gmra.mxu0 %v634
        %v705 = vpop.f32.mrf.mxu0
        %v706 = vadd.f32 0.0, %v705
        %v707 = vpop.f32.mrf.mxu0
        %708 = vmatprep.mubr.f32.mxu0 0.0
        %709 = vmatmul.mubr.f32.gmra.mxu0 %v637
        %v710 = vpop.f32.mrf.mxu0
        %v711 = vadd.f32 0.0, %v710
        %v712 = vpop.f32.mrf.mxu0
        %713 = vdwg.mxu0
        %714 = vst.msk [vmem:[%s329] sm:$0xff] %vm450, %v706
        %715 = vst.msk [vmem:[%s329 + $0x8] sm:$0xff] %vm450, %v711
        %716 = vst.msk [vmem:[%s351] sm:$0xff] %vm610, %v631
        %717 = vst.msk [vmem:[%s351 + $0x8] sm:$0xff] %vm610, %v632
        %s718 = sand.u32 %s145, 1
        %s719 = scalar_lea.sflag [#allocation4], %s718
        %s720 = sand.u32 %s145, 1
        %s721 = smul.addr %s720, 16
        %s722 = scalar_lea.vmem [#allocation10], %s721
        %s723 = smul.u32 2, %s32
        %p724 = scmp.lt.s32.totalorder %s31, 1
        %s725 = scalar_select %p724, %s31, 1
        %p726 = scmp.lt.s32.totalorder %s723, 1
        %s727 = scalar_select %p726, %s723, 1
        %s728 = smul.addr %s725, 2
        %s729 = sadd.s32 %s727, %s728
        %s730 = smul.addr %s729, 8
        %s731 = scalar_lea.vmem %s5, %s730
        // Predicated region
        $region53: #{tpu_custom_call.1} parent=35 // pred_check
          %p732 = pneg %p155
        $region54: #{tpu_custom_call.1} parent=35 // pred_check_branch
          %734 = sbr.rel (%p732) target = $region56
        $region55: #{tpu_custom_call.1} parent=35 // pred_region
          %s735 = smul.u32 2, %s32
          %s737 = ssub.s32 256, 256
          %738 = vsyncadd %s719, %s737
          %s739 = smul.addr %s31, 2
          %s740 = sadd.s32 %s735, %s739
          %s741 = smul.addr %s740, 128
          %s742 = scalar_lea.hbm %s4, %s741
          %s743 = sshll.u32 %s722, 4
          %s744 = int_to_ptr.vmem [resolvable:$true] %s743
          %749 = dma.vmem_to_hbm [thread:$0]  %s744, 256, %s742, %s719, 128, 128, 8
        $region56: #{tpu_custom_call.1} parent=35 // pred_fallthru
          _
        // Predicated region
        $region57: #{tpu_custom_call.1} parent=35 // pred_check
          %p750 = pneg %p183
        $region58: #{tpu_custom_call.1} parent=35 // pred_check_branch
          %752 = sbr.rel (%p750) target = $region60
        $region59: #{tpu_custom_call.1} parent=35 // pred_region
          %s753 = smul.u32 2, %s32
        $region60: #{tpu_custom_call.1} parent=35 // pred_fallthru
          _
      $region36: #{tpu_custom_call.1} parent=5 // pred_fallthru
        _
      %p754 = scmp.le.s32.totalorder 2, %s22
      // Predicated region
      $region61: #{tpu_custom_call.1} parent=5 // pred_check
        %p755 = pneg %p754
      $region62: #{tpu_custom_call.1} parent=5 // pred_check_branch
        %757 = sbr.rel (%p755) target = $region64
      $region63: #{tpu_custom_call.1} parent=5 // pred_region
        %s758 = ssub.s32 %s22, 2
        // Predicated region
        $region65: #{tpu_custom_call.1} parent=63 // pred_check
          %p759 = pneg %p161
        $region66: #{tpu_custom_call.1} parent=63 // pred_check_branch
          %761 = sbr.rel (%p759) target = $region68
        $region67: #{tpu_custom_call.1} parent=63 // pred_region
          %s762 = sand.u32 %s146, 1
          %s763 = scalar_lea.sflag [#allocation4], %s762
          %s764 = sand.u32 %s146, 1
          %s765 = smul.addr %s764, 16
          %s766 = scalar_lea.vmem [#allocation10], %s765
          %767 = dma.done %s763, 256
        $region68: #{tpu_custom_call.1} parent=63 // pred_fallthru
          _
        // Predicated region
        $region69: #{tpu_custom_call.1} parent=63 // pred_check
          %p768 = pneg %p189
        $region70: #{tpu_custom_call.1} parent=63 // pred_check_branch
          %770 = sbr.rel (%p768) target = $region72
        $region71: #{tpu_custom_call.1} parent=63 // pred_region
          %s771 = smul.u32 2, %s34
          %p772 = scmp.lt.s32.totalorder %s33, 1
          %s773 = scalar_select %p772, %s33, 1
          %p774 = scmp.lt.s32.totalorder %s771, 1
          %s775 = scalar_select %p774, %s771, 1
          %s776 = smul.addr %s773, 2
          %s777 = sadd.s32 %s775, %s776
          %s778 = smul.addr %s777, 8
          %s779 = scalar_lea.vmem %s5, %s778
        $region72: #{tpu_custom_call.1} parent=63 // pred_fallthru
          _
      $region64: #{tpu_custom_call.1} parent=5 // pred_fallthru
        _
    $region6: #{tpu_custom_call.1} parent=1 // loop_footer
      %s26 = sadd.s32 1, %s22
    $region7: #{tpu_custom_call.1} parent=1 // loop_footer_branch
      %21 = sbr.rel target = $region3
    $region8: #{tpu_custom_call.1} parent=1 // loop_exit
      _
    %780 = vsyncpa [#allocation3], 1
    %s781 = scalar_lea.sflag [#allocation3], 1
    %782 = vsyncpa %s781, 1
    %783 = vsyncpa [#allocation6], 1
    %s784 = scalar_lea.sflag [#allocation6], 1
    %785 = vsyncpa %s784, 1
    %786 = vsyncpa [#allocation9], 1
    %787 = vsyncpa [#allocation4], 1
    %s788 = scalar_lea.sflag [#allocation4], 1
    %789 = vsyncpa %s788, 1

</llo_original>
